<compile_context>
chip_gen: v7x
topology: tpu7x:2x2x1
jax: 0.10.0
libtpu: 0.0.40
codegen_flags: <defaults>
</compile_context>

<pallas_src>
import math

import jax
import jax.numpy as jnp
from jax.experimental import pallas as pl
from jax.experimental.pallas import tpu as pltpu

NEG_SLOPE = 0.2      # LeakyReLU negative slope used by GATConv
NEG_INF = -1e30      # mask fill value (matches dense edge_softmax reference)


def _round_up(x, m):
    return ((x + m - 1) // m) * m


# ---------------------------------------------------------------------------
# Kernel 1: fused per-node projection (fc + residual fc + attention vectors)
# ---------------------------------------------------------------------------
def _make_proj_kernel(num_heads, out_feats, has_res):
    H, F = num_heads, out_feats
    HF = H * F

    def kernel(h_ref, w_ref, al_ref, ar_ref, *out_refs):
        ft_ref, el_ref, er_ref = out_refs[0], out_refs[1], out_refs[2]
        # single wide MXU matmul: [ft for all heads | residual proj (optional)]
        prod = jnp.dot(h_ref[...], w_ref[...],
                       preferred_element_type=jnp.float32)       # (Tn, HF or 2HF)
        ft = prod[:, :HF]
        ft_ref[...] = ft.astype(ft_ref.dtype)
        wl = ft * al_ref[...]                                     # (Tn, HF)
        wr = ft * ar_ref[...]
        el_cols, er_cols = [], []
        for hh in range(H):
            sl = slice(hh * F, (hh + 1) * F)
            el_cols.append(jnp.sum(wl[:, sl], axis=-1, keepdims=True))
            er_cols.append(jnp.sum(wr[:, sl], axis=-1, keepdims=True))
        el_ref[...] = jnp.concatenate(el_cols, axis=-1)           # (Tn, H)
        er_ref[...] = jnp.concatenate(er_cols, axis=-1)           # (Tn, H)
        if has_res:
            out_refs[3][...] = prod[:, HF:2 * HF]                 # residual proj

    return kernel


# ---------------------------------------------------------------------------
# Kernel 2: edge-softmax attention + aggregation with online softmax over src
# ---------------------------------------------------------------------------
def _make_attn_kernel(num_heads, out_feats, identity_res, mma_dtype, approx_recip):
    H, F = num_heads, out_feats

    def kernel(adj_ref, ft_ref, el_ref, er_ref, res_ref, out_ref,
               m_scr, l_scr, acc_scr):
        si = pl.program_id(1)

        @pl.when(si == 0)
        def _init():
            m_scr[...] = jnp.full(m_scr.shape, NEG_INF, dtype=m_scr.dtype)
            l_scr[...] = jnp.zeros(l_scr.shape, dtype=l_scr.dtype)
            acc_scr[...] = jnp.zeros(acc_scr.shape, dtype=acc_scr.dtype)

        adj = adj_ref[...]                        # (Tdst, Tsrc) bf16 0/1 mask
        mask = adj > 0
        el = el_ref[...]                          # (Tsrc, H) f32
        er = er_ref[...]                          # (Tdst, H) f32
        ft = ft_ref[...]                          # (Tsrc, H*F) mma dtype

        for hh in range(H):
            # e[v, u] = leaky_relu(el[u] + er[v]) for the current tile
            e = er[:, hh:hh + 1] + el[:, hh:hh + 1].T             # (Tdst, Tsrc)
            e = jnp.where(e >= 0, e, NEG_SLOPE * e)
            s = jnp.where(mask, e, NEG_INF)
            m_prev = m_scr[hh]                                    # (Tdst, 1)
            m_new = jnp.maximum(m_prev, jnp.max(s, axis=-1, keepdims=True))
            alpha = jnp.exp(m_prev - m_new)
            p = jnp.where(mask, jnp.exp(s - m_new), 0.0)          # zero on non-edges
            l_scr[hh] = alpha * l_scr[hh] + jnp.sum(p, axis=-1, keepdims=True)
            ft_h = ft[:, hh * F:(hh + 1) * F]
            pv = jnp.dot(p.astype(mma_dtype), ft_h.astype(mma_dtype),
                         preferred_element_type=jnp.float32)      # (Tdst, F)
            acc_scr[hh] = alpha * acc_scr[hh] + pv
            m_scr[hh] = m_new

        @pl.when(si == pl.num_programs(1) - 1)
        def _finalize():
            res = res_ref[...].astype(jnp.float32)
            cols = []
            for hh in range(H):
                l_h = jnp.maximum(l_scr[hh], 1e-30)
                if approx_recip:
                    rst = acc_scr[hh] * pl.reciprocal(l_h, approx=True)
                else:
                    rst = acc_scr[hh] / l_h
                rst = rst + (res if identity_res else res[:, hh * F:(hh + 1) * F])
                # ELU (clamp the exp argument so the positive branch never overflows)
                rst = jnp.where(rst > 0, rst,
                                jnp.exp(jnp.minimum(rst, 0.0)) - 1.0)
                cols.append(rst)
            # single lane-dense store of the merged ('cat') per-head outputs
            out_ref[...] = jnp.concatenate(cols, axis=-1).astype(out_ref.dtype)

    return kernel


# ---------------------------------------------------------------------------
# Wrapper
# ---------------------------------------------------------------------------
def multi_head_gat_forward(h, adj, params, e_w=None, *, precision="bf16",
                           tile_dst=None, tile_src=None):
    """MultiHeadGATLayer forward (merge='cat').

    h      : (N, Fin) node features.
    adj    : (N, N) dense 0/1 mask, adj[v, u] = 1 <=> edge u -> v.
    params : (W, attn_l, attn_r, Wres); W (H, Fout, Fin), attn_l/r (H, 1, Fout),
             Wres (H, Fout, Fin) or None (res_fc == Identity when Fin == Fout).
    precision: "bf16" -> attn @ ft in bf16 (f32 accumulate), "f32" -> full f32.
    """
    # TODO(synk): att_ew=True branch (edge-feature attention term from e_w) is not
    # implemented; MultiHeadGATLayer defaults use att_ew=False so e_w is ignored.
    del e_w
    W, al, ar, Wres = params
    H, Fout, Fin = W.shape
    N = h.shape[0]
    HF = H * Fout
    identity_res = Wres is None
    if identity_res and Fin != Fout:
        raise ValueError("identity residual requires Fin == Fout")

    mma_dtype = jnp.bfloat16 if precision == "bf16" else jnp.float32
    approx = precision == "bf16"

    # -- fused, pre-transposed projection weights (no in-kernel transposes) ---
    w_cols = jnp.transpose(W, (2, 0, 1)).reshape(Fin, HF)         # h @ w_cols == fc
    if identity_res:
        w_fused = w_cols
    else:
        w_fused = jnp.concatenate(
            [w_cols, jnp.transpose(Wres, (2, 0, 1)).reshape(Fin, HF)], axis=1)
    al_row = al[:, 0, :].reshape(1, HF)
    ar_row = ar[:, 0, :].reshape(1, HF)

    # -- tiling / padding ------------------------------------------------------
    if tile_dst is None and tile_src is None:
        if N <= 512:
            Np = _round_up(max(N, 8), 8)
            t_dst = t_src = Np                  # single tile each way
        else:
            t_dst, t_src = 256, 512             # VMEM-safe on v7x (64 MiB)
            Np = _round_up(N, 512)
    else:
        assert tile_dst is not None and tile_src is not None
        t_dst, t_src = tile_dst, tile_src
        Np = _round_up(max(N, 8), math.lcm(t_dst, t_src))
        assert t_dst % 8 == 0
        assert t_src % 128 == 0 or t_src == Np

    if Np != N:
        h = jnp.pad(h, ((0, Np - N), (0, 0)))
        adj = jnp.pad(adj, ((0, Np - N), (0, Np - N)))
    adj_bf = adj.astype(jnp.bfloat16)           # halve adjacency HBM traffic

    # -- kernel 1: fused projection -------------------------------------------
    proj_out_shape = [
        jax.ShapeDtypeStruct((Np, HF), mma_dtype),    # ft (all heads)
        jax.ShapeDtypeStruct((Np, H), jnp.float32),   # el
        jax.ShapeDtypeStruct((Np, H), jnp.float32),   # er
    ]
    proj_out_specs = [
        pl.BlockSpec((t_dst, HF), lambda i: (i, 0)),
        pl.BlockSpec((t_dst, H), lambda i: (i, 0)),
        pl.BlockSpec((t_dst, H), lambda i: (i, 0)),
    ]
    if not identity_res:
        proj_out_shape.append(jax.ShapeDtypeStruct((Np, HF), jnp.float32))
        proj_out_specs.append(pl.BlockSpec((t_dst, HF), lambda i: (i, 0)))

    proj = pl.pallas_call(
        _make_proj_kernel(H, Fout, not identity_res),
        out_shape=tuple(proj_out_shape),
        grid_spec=pltpu.PrefetchScalarGridSpec(
            num_scalar_prefetch=0,
            grid=(Np // t_dst,),
            in_specs=[
                pl.BlockSpec((t_dst, Fin), lambda i: (i, 0)),                 # h
                pl.BlockSpec((Fin, w_fused.shape[1]), lambda i: (0, 0)),      # W_fused
                pl.BlockSpec((1, HF), lambda i: (0, 0)),                      # attn_l
                pl.BlockSpec((1, HF), lambda i: (0, 0)),                      # attn_r
            ],
            out_specs=tuple(proj_out_specs),
        ),
        compiler_params=pltpu.CompilerParams(dimension_semantics=("parallel",)),
    )(h, w_fused, al_row, ar_row)

    if identity_res:
        ft, el, er = proj
        res = h                                  # Identity residual: add h directly
    else:
        ft, el, er, res = proj

    # -- kernel 2: edge-softmax attention + aggregation ------------------------
    n_dst, n_src = Np // t_dst, Np // t_src
    itemsize = jnp.dtype(mma_dtype).itemsize
    cost = pl.CostEstimate(
        flops=int(2 * Np * Np * HF + 8 * Np * Np * H),
        transcendentals=int(Np * Np * H),
        bytes_accessed=int(Np * Np * 2 + n_dst * Np * HF * itemsize
                           + 3 * Np * HF * 4),
    )

    out = pl.pallas_call(
        _make_attn_kernel(H, Fout, identity_res, mma_dtype, approx),
        out_shape=jax.ShapeDtypeStruct((Np, HF), jnp.float32),
        grid_spec=pltpu.PrefetchScalarGridSpec(
            num_scalar_prefetch=0,
            grid=(n_dst, n_src),
            in_specs=[
                pl.BlockSpec((t_dst, t_src), lambda di, si: (di, si)),        # adj
                pl.BlockSpec((t_src, HF), lambda di, si: (si, 0)),            # ft (src)
                pl.BlockSpec((t_src, H), lambda di, si: (si, 0)),             # el (src)
                pl.BlockSpec((t_dst, H), lambda di, si: (di, 0)),             # er (dst)
                pl.BlockSpec((t_dst, res.shape[1]), lambda di, si: (di, 0)),  # residual
            ],
            out_specs=pl.BlockSpec((t_dst, HF), lambda di, si: (di, 0)),
            scratch_shapes=[
                pltpu.VMEM((H, t_dst, 1), jnp.float32),     # running max
                pltpu.VMEM((H, t_dst, 1), jnp.float32),     # running denom
                pltpu.VMEM((H, t_dst, Fout), jnp.float32),  # running accumulator
            ],
        ),
        compiler_params=pltpu.CompilerParams(
            dimension_semantics=("parallel", "arbitrary")),
        cost_estimate=cost,
    )(adj_bf, ft, el, er, res)

    return out[:N]


# ---------------------------------------------------------------------------
# Pure-JAX reference mirroring the PyTorch/DGL semantics
# ---------------------------------------------------------------------------
def reference_forward(h, adj, params):
    W, al, ar, Wres = params
    outs = []
    for i in range(W.shape[0]):
        ft = h @ W[i].T
        el = (ft * al[i]).sum(-1, keepdims=True)
        er = (ft * ar[i]).sum(-1, keepdims=True)
        e = er + el.T
        e = jnp.where(e >= 0, e, NEG_SLOPE * e)
        masked = jnp.where(adj > 0, e, NEG_INF)
        m = masked.max(-1, keepdims=True)
        p = jnp.exp(masked - m) * adj
        a = p / jnp.maximum(p.sum(-1, keepdims=True), 1e-30)
        resv = h if Wres is None else h @ Wres[i].T
        rst = a @ ft + resv
        outs.append(jnp.where(rst > 0, rst, jnp.exp(jnp.minimum(rst, 0.0)) - 1.0))
    return jnp.concatenate(outs, axis=1)


def init_params(key, num_heads, in_feats, out_feats):
    """xavier_normal-style init (gain = sqrt(2)), matching reset_parameters."""
    gain = 2.0 ** 0.5
    k_w, k_l, k_r, k_res = jax.random.split(key, 4)
    std_fc = gain * (2.0 / (in_feats + out_feats)) ** 0.5
    std_attn = gain * (2.0 / (1.0 + out_feats)) ** 0.5
    W = std_fc * jax.random.normal(k_w, (num_heads, out_feats, in_feats), jnp.float32)
    al = std_attn * jax.random.normal(k_l, (num_heads, 1, out_feats), jnp.float32)
    ar = std_attn * jax.random.normal(k_r, (num_heads, 1, out_feats), jnp.float32)
    if in_feats == out_feats:
        Wres = None                      # res_fc == Identity()
    else:
        Wres = std_fc * jax.random.normal(
            k_res, (num_heads, out_feats, in_feats), jnp.float32)
    return W, al, ar, Wres


if __name__ == "__main__":
    key = jax.random.PRNGKey(0)

    def make_graph(k, n, fin):
        k1, k2 = jax.random.split(k)
        hh = jax.random.normal(k1, (n, fin), jnp.float32)
        a = jax.random.bernoulli(k2, 0.4, (n, n)).astype(jnp.float32)
        a = jnp.maximum(a, jnp.eye(n, dtype=jnp.float32))   # self loops
        return hh, a

    k1, k2, k3, k4 = jax.random.split(key, 4)

    # Case 1: small graph, Linear residual (Fin != Fout), single-tile path.
    N, F_IN, F_OUT, H = 8, 32, 16, 2
    h, adj = make_graph(k1, N, F_IN)
    params = init_params(k2, H, F_IN, F_OUT)
    e_w = jnp.ones((int(adj.sum()), 2), jnp.float32)   # unused (att_ew=False)
    ref = reference_forward(h, adj, params)

    out32 = jax.block_until_ready(
        multi_head_gat_forward(h, adj, params, e_w, precision="f32"))
    assert out32.shape == (N, H * F_OUT), out32.shape
    # tolerance covers TPU matmul-precision / reassociation differences only
    assert jnp.allclose(out32, ref, rtol=1e-2, atol=1e-2), \
        float(jnp.max(jnp.abs(out32 - ref)))

    outbf = jax.block_until_ready(
        multi_head_gat_forward(h, adj, params, e_w, precision="bf16"))
    assert jnp.allclose(outbf, ref, rtol=5e-2, atol=5e-2), \
        float(jnp.max(jnp.abs(outbf - ref)))

    # Case 2: identity residual (Fin == Fout), padded multi-tile online-softmax
    # path (N=192 -> padded 256, 2x2 dst/src tiles), odd head count.
    N2, F2, H2 = 192, 16, 3
    h2, adj2 = make_graph(k3, N2, F2)
    params2 = init_params(k4, H2, F2, F2)
    ref2 = reference_forward(h2, adj2, params2)
    out2 = jax.block_until_ready(
        multi_head_gat_forward(h2, adj2, params2, None, precision="f32",
                               tile_dst=128, tile_src=128))
    assert out2.shape == (N2, H2 * F2), out2.shape
    assert jnp.allclose(out2, ref2, rtol=1e-2, atol=1e-2), \
        float(jnp.max(jnp.abs(out2 - ref2)))

    print("KERNEL_OK")
</pallas_src>

<mosaic_0001>
module attributes {stable_mosaic.version = 11 : i64} {
  func.func @kernel(%arg0: i32, %arg1: memref<8x32xf32, #tpu.memory_space<vmem>>, %arg2: memref<32x64xf32, #tpu.memory_space<vmem>>, %arg3: memref<1x32xf32, #tpu.memory_space<vmem>>, %arg4: memref<1x32xf32, #tpu.memory_space<vmem>>, %arg5: memref<8x32xf32, #tpu.memory_space<vmem>>, %arg6: memref<8x2xf32, #tpu.memory_space<vmem>>, %arg7: memref<8x2xf32, #tpu.memory_space<vmem>>, %arg8: memref<8x32xf32, #tpu.memory_space<vmem>>) attributes {dimension_semantics = [#tpu.dimension_semantics<parallel>], iteration_bounds = array<i64: 1>, scalar_prefetch = 0 : i64, scratch_operands = 0 : i64, tpu.core_type = #tpu.core_type<tc>, window_params = [{transform_indices = @transform_0, window_bounds = array<i64: 8, 32>}, {pipeline_mode = #tpu.pipeline_mode<synchronous>, transform_indices = @transform_1, window_bounds = array<i64: 32, 64>}, {pipeline_mode = #tpu.pipeline_mode<synchronous>, transform_indices = @transform_2, window_bounds = array<i64: 1, 32>}, {pipeline_mode = #tpu.pipeline_mode<synchronous>, transform_indices = @transform_3, window_bounds = array<i64: 1, 32>}, {transform_indices = @transform_4, window_bounds = array<i64: 8, 32>}, {transform_indices = @transform_5, window_bounds = array<i64: 8, 2>}, {transform_indices = @transform_6, window_bounds = array<i64: 8, 2>}, {transform_indices = @transform_7, window_bounds = array<i64: 8, 32>}]} {
    %c0 = arith.constant 0 : index
    %c0_0 = arith.constant 0 : index
    %0 = vector.load %arg1[%c0, %c0_0] : memref<8x32xf32, #tpu.memory_space<vmem>>, vector<8x32xf32>
    %c0_1 = arith.constant 0 : index
    %c0_2 = arith.constant 0 : index
    %1 = vector.load %arg2[%c0_1, %c0_2] : memref<32x64xf32, #tpu.memory_space<vmem>>, vector<32x64xf32>
    %cst = arith.constant dense<0.000000e+00> : vector<8x64xf32>
    %2 = tpu.matmul %0, %1, %cst {dimension_numbers = #tpu.dot_dimension_numbers<[1], [0], [0], [1], [0, 0, 1, 1], [], []>} : vector<8x32xf32>, vector<32x64xf32>, vector<8x64xf32> -> vector<8x64xf32>
    %3 = vector.extract_strided_slice %2 {offsets = [0, 0], sizes = [8, 32], strides = [1, 1]} : vector<8x64xf32> to vector<8x32xf32>
    %c0_3 = arith.constant 0 : index
    %c0_4 = arith.constant 0 : index
    %4 = vector.load %arg5[%c0_3, %c0_4] : memref<8x32xf32, #tpu.memory_space<vmem>>, vector<8x32xf32>
    tpu.vector_store %arg5[%c0_3, %c0_4], %3 {strides = array<i32>} : memref<8x32xf32, #tpu.memory_space<vmem>>, vector<8x32xf32>,
    %c0_5 = arith.constant 0 : index
    %c0_6 = arith.constant 0 : index
    %5 = vector.load %arg3[%c0_5, %c0_6] : memref<1x32xf32, #tpu.memory_space<vmem>>, vector<1x32xf32>
    %6 = vector.broadcast %5 : vector<1x32xf32> to vector<8x32xf32>
    %7 = arith.mulf %3, %6 : vector<8x32xf32>
    %c0_7 = arith.constant 0 : index
    %c0_8 = arith.constant 0 : index
    %8 = vector.load %arg4[%c0_7, %c0_8] : memref<1x32xf32, #tpu.memory_space<vmem>>, vector<1x32xf32>
    %9 = vector.broadcast %8 : vector<1x32xf32> to vector<8x32xf32>
    %10 = arith.mulf %3, %9 : vector<8x32xf32>
    %11 = vector.extract_strided_slice %7 {offsets = [0, 0], sizes = [8, 16], strides = [1, 1]} : vector<8x32xf32> to vector<8x16xf32>
    %cst_9 = arith.constant dense<0.000000e+00> : vector<8xf32>
    %12 = vector.multi_reduction <add>, %11, %cst_9 [1] : vector<8x16xf32> to vector<8xf32>
    %13 = vector.shape_cast %12 : vector<8xf32> to vector<8x1xf32>
    %14 = vector.extract_strided_slice %10 {offsets = [0, 0], sizes = [8, 16], strides = [1, 1]} : vector<8x32xf32> to vector<8x16xf32>
    %cst_10 = arith.constant dense<0.000000e+00> : vector<8xf32>
    %15 = vector.multi_reduction <add>, %14, %cst_10 [1] : vector<8x16xf32> to vector<8xf32>
    %16 = vector.shape_cast %15 : vector<8xf32> to vector<8x1xf32>
    %17 = vector.extract_strided_slice %7 {offsets = [0, 16], sizes = [8, 16], strides = [1, 1]} : vector<8x32xf32> to vector<8x16xf32>
    %cst_11 = arith.constant dense<0.000000e+00> : vector<8xf32>
    %18 = vector.multi_reduction <add>, %17, %cst_11 [1] : vector<8x16xf32> to vector<8xf32>
    %19 = vector.shape_cast %18 : vector<8xf32> to vector<8x1xf32>
    %20 = vector.extract_strided_slice %10 {offsets = [0, 16], sizes = [8, 16], strides = [1, 1]} : vector<8x32xf32> to vector<8x16xf32>
    %cst_12 = arith.constant dense<0.000000e+00> : vector<8xf32>
    %21 = vector.multi_reduction <add>, %20, %cst_12 [1] : vector<8x16xf32> to vector<8xf32>
    %22 = vector.shape_cast %21 : vector<8xf32> to vector<8x1xf32>
    %23 = tpu.concatenate %13, %19 in 1 : vector<8x1xf32>, vector<8x1xf32> -> vector<8x2xf32>
    %c0_13 = arith.constant 0 : index
    %c0_14 = arith.constant 0 : index
    %24 = vector.load %arg6[%c0_13, %c0_14] : memref<8x2xf32, #tpu.memory_space<vmem>>, vector<8x2xf32>
    tpu.vector_store %arg6[%c0_13, %c0_14], %23 {strides = array<i32>} : memref<8x2xf32, #tpu.memory_space<vmem>>, vector<8x2xf32>,
    %25 = tpu.concatenate %16, %22 in 1 : vector<8x1xf32>, vector<8x1xf32> -> vector<8x2xf32>
    %c0_15 = arith.constant 0 : index
    %c0_16 = arith.constant 0 : index
    %26 = vector.load %arg7[%c0_15, %c0_16] : memref<8x2xf32, #tpu.memory_space<vmem>>, vector<8x2xf32>
    tpu.vector_store %arg7[%c0_15, %c0_16], %25 {strides = array<i32>} : memref<8x2xf32, #tpu.memory_space<vmem>>, vector<8x2xf32>,
    %27 = vector.extract_strided_slice %2 {offsets = [0, 32], sizes = [8, 32], strides = [1, 1]} : vector<8x64xf32> to vector<8x32xf32>
    %c0_17 = arith.constant 0 : index
    %c0_18 = arith.constant 0 : index
    %28 = vector.load %arg8[%c0_17, %c0_18] : memref<8x32xf32, #tpu.memory_space<vmem>>, vector<8x32xf32>
    tpu.vector_store %arg8[%c0_17, %c0_18], %27 {strides = array<i32>} : memref<8x32xf32, #tpu.memory_space<vmem>>, vector<8x32xf32>,
    return
  }
  func.func @transform_0(%arg0: i32) -> (i32, i32) {
    %c0_i32 = arith.constant 0 : i32
    %c0_i32_0 = arith.constant 0 : i32
    return %arg0, %c0_i32 : i32, i32
  }
  func.func @transform_1(%arg0: i32) -> (i32, i32) {
    %c0_i32 = arith.constant 0 : i32
    %c0_i32_0 = arith.constant 0 : i32
    %c0_i32_1 = arith.constant 0 : i32
    return %c0_i32, %c0_i32_0 : i32, i32
  }
  func.func @transform_2(%arg0: i32) -> (i32, i32) {
    %c0_i32 = arith.constant 0 : i32
    %c0_i32_0 = arith.constant 0 : i32
    %c0_i32_1 = arith.constant 0 : i32
    return %c0_i32, %c0_i32_0 : i32, i32
  }
  func.func @transform_3(%arg0: i32) -> (i32, i32) {
    %c0_i32 = arith.constant 0 : i32
    %c0_i32_0 = arith.constant 0 : i32
    %c0_i32_1 = arith.constant 0 : i32
    return %c0_i32, %c0_i32_0 : i32, i32
  }
  func.func @transform_4(%arg0: i32) -> (i32, i32) {
    %c0_i32 = arith.constant 0 : i32
    %c0_i32_0 = arith.constant 0 : i32
    return %arg0, %c0_i32 : i32, i32
  }
  func.func @transform_5(%arg0: i32) -> (i32, i32) {
    %c0_i32 = arith.constant 0 : i32
    %c0_i32_0 = arith.constant 0 : i32
    return %arg0, %c0_i32 : i32, i32
  }
  func.func @transform_6(%arg0: i32) -> (i32, i32) {
    %c0_i32 = arith.constant 0 : i32
    %c0_i32_0 = arith.constant 0 : i32
    return %arg0, %c0_i32 : i32, i32
  }
  func.func @transform_7(%arg0: i32) -> (i32, i32) {
    %c0_i32 = arith.constant 0 : i32
    %c0_i32_0 = arith.constant 0 : i32
    return %arg0, %c0_i32 : i32, i32
  }
}

</mosaic_0001>

<llo_original>
// kernel: tpu_custom_call.1
$region0: #{tpu_custom_call.1}
  #allocation0 [shape = 'u32[]', space=smem, size = 0x4, offset = 0x4, fixed_abs, tag = 'smem constant byte address 0x4 - core index']
  #allocation1 [shape = 'u32[144,128]{1,0:T(1,128)}', space=vmem, size = 0x12000, scoped, tag = 'internal scratch']
  %s0 = inlined_call_operand.hbm [shape: f32[8,32], index: 0, kind: input, shape index: {}]
  %s1 = inlined_call_operand.hbm [shape: f32[32,64], index: 1, kind: input, shape index: {}]
  %s2 = inlined_call_operand.vmem [shape: f32[1,32], index: 2, kind: input, shape index: {}]
  %s3 = inlined_call_operand.vmem [shape: f32[1,32], index: 3, kind: input, shape index: {}]
  %s4 = inlined_call_operand.hbm [shape: f32[8,32], index: 4, kind: output, shape index: {0}]
  %s5 = inlined_call_operand.vmem [shape: f32[8,2], index: 5, kind: output, shape index: {1}]
  %s6 = inlined_call_operand.vmem [shape: f32[8,2], index: 6, kind: output, shape index: {2}]
  %s7 = inlined_call_operand.hbm [shape: f32[8,32], index: 7, kind: output, shape index: {3}]
  %8 = xla_tuple %s4, %s5, %s6, %s7
  %s9 = sld [smem:[#allocation0]]
  $region58: #{tpu_custom_call.1} parent=0
    _
  %s11 = ssub.s32 1, %s9
  %s12 = scalar_select 0, %s11, %s9
  $region1: #{tpu_custom_call.1} parent=0
    #allocation2 [shape = 'u8[4096]{0}', space=vmem, size = 0x1000, scoped, tag = 'input window, operand 0, single buffered']
    #allocation3 [shape = 's32[1]{0}', space=sflag, size = 0x4, scoped, tag = 'scoped memory for tpu_custom_call.1']
    #allocation4 [shape = 's32[1]{0}', space=sflag, size = 0x4, scoped, tag = 'scoped memory for tpu_custom_call.1']
    #allocation5 [shape = 'u8[16384]{0}', space=vmem, size = 0x4000, scoped, tag = 'input window, operand 1, single buffered']
    #allocation6 [shape = 's32[1]{0}', space=sflag, size = 0x4, scoped, tag = 'scoped memory for tpu_custom_call.1']
    #allocation7 [shape = 'u8[4096]{0}', space=vmem, size = 0x1000, scoped, tag = 'output window, operand 0, single buffered']
    #allocation8 [shape = 'u8[4096]{0}', space=vmem, size = 0x1000, scoped, tag = 'output window, operand 3, single buffered']
    #allocation9 [shape = 's32[1]{0}', space=sflag, size = 0x4, scoped, tag = 'scoped memory for tpu_custom_call.1']
    %13 = vsyncpa [#allocation3], 0
    %14 = vsyncpa [#allocation6], 0
    %15 = vsyncpa [#allocation4], 0
    %16 = vsyncpa [#allocation9], 0
    // Predicated region
    $region2: #{tpu_custom_call.1} parent=1 // pred_check
      _
    $region3: #{tpu_custom_call.1} parent=1 // pred_check_branch
      %18 = sbr.rel (0) target = $region5
    $region4: #{tpu_custom_call.1} parent=1 // pred_region
      %s20 = ssub.s32 128, 128
      %21 = vsyncadd [#allocation3], %s20
      %s23 = sshll.u32 [#allocation2], 4
      %s24 = int_to_ptr.vmem [resolvable:$true] %s23
      %26 = dma.hbm_to_vmem [thread:$0]  %s0, 128, %s24, [#allocation3]
    $region5: #{tpu_custom_call.1} parent=1 // pred_fallthru
      _
    // Predicated region
    $region6: #{tpu_custom_call.1} parent=1 // pred_check
      _
    $region7: #{tpu_custom_call.1} parent=1 // pred_check_branch
      %28 = sbr.rel (0) target = $region9
    $region8: #{tpu_custom_call.1} parent=1 // pred_region
      %s30 = ssub.s32 512, 512
      %31 = vsyncadd [#allocation6], %s30
      %s32 = sshll.u32 [#allocation5], 4
      %s33 = int_to_ptr.vmem [resolvable:$true] %s32
      %38 = dma.hbm_to_vmem [thread:$0]  %s1, 512, %s33, [#allocation6], 128, 128, 8
    $region9: #{tpu_custom_call.1} parent=1 // pred_fallthru
      _
    // Predicated region
    $region10: #{tpu_custom_call.1} parent=1 // pred_check
      _
    $region11: #{tpu_custom_call.1} parent=1 // pred_check_branch
      %40 = sbr.rel (0) target = $region13
    $region12: #{tpu_custom_call.1} parent=1 // pred_region
      _
    $region13: #{tpu_custom_call.1} parent=1 // pred_fallthru
      _
    // Predicated region
    $region14: #{tpu_custom_call.1} parent=1 // pred_check
      _
    $region15: #{tpu_custom_call.1} parent=1 // pred_check_branch
      %42 = sbr.rel (0) target = $region17
    $region16: #{tpu_custom_call.1} parent=1 // pred_region
      _
    $region17: #{tpu_custom_call.1} parent=1 // pred_fallthru
      _
    // Predicated region
    $region18: #{tpu_custom_call.1} parent=1 // pred_check
      _
    $region19: #{tpu_custom_call.1} parent=1 // pred_check_branch
      %44 = sbr.rel (0) target = $region21
    $region20: #{tpu_custom_call.1} parent=1 // pred_region
      %45 = dma.done [#allocation3], 128
    $region21: #{tpu_custom_call.1} parent=1 // pred_fallthru
      _
    // Predicated region
    $region22: #{tpu_custom_call.1} parent=1 // pred_check
      _
    $region23: #{tpu_custom_call.1} parent=1 // pred_check_branch
      %47 = sbr.rel (0) target = $region25
    $region24: #{tpu_custom_call.1} parent=1 // pred_region
      %48 = dma.done [#allocation6], 512
    $region25: #{tpu_custom_call.1} parent=1 // pred_fallthru
      _
    %v49 = vld [vmem:[#allocation2] sm:$0xff]
    %v50 = vld [vmem:[#allocation5] sm:$0xff]
    %v51 = vld [vmem:[#allocation5 + $0x8] sm:$0xff]
    %v52 = vld [vmem:[#allocation5 + $0x10] sm:$0xff]
    %v53 = vld [vmem:[#allocation5 + $0x18] sm:$0xff]
    %vm54 = vcmask 261120
    %v56 = vsel %vm54, %v49, 0
    %58 = vmatprep.subr.mxu0 0.0
    %59 = vmatpush1.msra.mxu0 %v50
    %60 = vmatprep.subr.mxu0 0.0
    %61 = vmatpush1.msra.mxu0 %v51
    %62 = vmatprep.subr.mxu0 0.0
    %63 = vmatpush1.msra.mxu0 %v52
    %64 = vmatprep.subr.mxu0 0.0
    %65 = vmatpush1.msra.mxu0 %v53
    %66 = vmatprep.subr.mxu0 0.0
    %67 = vmatpush1.msra.mxu0 0.0
    %68 = vmatprep.subr.mxu0 0.0
    %69 = vmatpush1.msra.mxu0 0.0
    %70 = vmatprep.subr.mxu0 0.0
    %71 = vmatpush1.msra.mxu0 0.0
    %72 = vmatprep.subr.mxu0 0.0
    %73 = vmatpush1.msra.mxu0 0.0
    %74 = vmatprep.subr.mxu0 0.0
    %75 = vmatpush1.msra.mxu0 0.0
    %76 = vmatprep.subr.mxu0 0.0
    %77 = vmatpush1.msra.mxu0 0.0
    %78 = vmatprep.subr.mxu0 0.0
    %79 = vmatpush1.msra.mxu0 0.0
    %80 = vmatprep.subr.mxu0 0.0
    %81 = vmatpush1.msra.mxu0 0.0
    %82 = vmatprep.subr.mxu0 0.0
    %83 = vmatpush1.msra.mxu0 0.0
    %84 = vmatprep.subr.mxu0 0.0
    %85 = vmatpush1.msra.mxu0 0.0
    %86 = vmatprep.subr.mxu0 0.0
    %87 = vmatpush1.msra.mxu0 0.0
    %88 = vmatprep.subr.mxu0 0.0
    %89 = vmatpush1.msra.mxu0 0.0
    %90 = vmatprep.subr.mxu0 0.0
    %91 = vmatpush1.msra.mxu0 0.0
    %92 = vmatprep.subr.mxu0 0.0
    %93 = vmatpush1.msra.mxu0 0.0
    %94 = vmatprep.subr.mxu0 0.0
    %95 = vmatpush1.msra.mxu0 0.0
    %96 = vmatprep.subr.mxu0 0.0
    %97 = vmatpush1.msra.mxu0 0.0
    %98 = vmatprep.subr.mxu0 0.0
    %99 = vmatpush1.msra.mxu0 0.0
    %100 = vmatprep.subr.mxu0 0.0
    %101 = vmatpush1.msra.mxu0 0.0
    %102 = vmatprep.subr.mxu0 0.0
    %103 = vmatpush1.msra.mxu0 0.0
    %104 = vmatprep.subr.mxu0 0.0
    %105 = vmatpush1.msra.mxu0 0.0
    %106 = vmatprep.subr.mxu0 0.0
    %107 = vmatpush1.msra.mxu0 0.0
    %108 = vmatprep.subr.mxu0 0.0
    %109 = vmatpush1.msra.mxu0 0.0
    %110 = vmatprep.subr.mxu0 0.0
    %111 = vmatpush1.msra.mxu0 0.0
    %112 = vmatprep.subr.mxu0 0.0
    %113 = vmatpush1.msra.mxu0 0.0
    %114 = vmatprep.subr.mxu0 0.0
    %115 = vmatpush1.msra.mxu0 0.0
    %116 = vmatprep.subr.mxu0 0.0
    %117 = vmatpush1.msra.mxu0 0.0
    %118 = vmatprep.subr.mxu0 0.0
    %119 = vmatpush1.msra.mxu0 0.0
    %120 = vmatprep.subr.mxu0 0.0
    %121 = vmatpush1.msra.mxu0 0.0
    %122 = vmatprep.mubr.f32.mxu0 0.0
    %123 = vmatmul.mubr.f32.gmra.mrb[0].mxu0 %v56
    %v124 = vpop.f32.mrb[0].mxu0
    %v125 = vadd.f32 0.0, %v124
    %v126 = vpop.f32.mrb[0].mxu0
    %127 = vdwg.mxu0
    %128 = vst.msk [vmem:[#allocation7] sm:$0xff] %vm54, %v125
    %v129 = vld [vmem:[%s2] sm:$0x1]
    %v131 = vlaneseq
    %v132 = vshrl.u32 %v131, 7
    %v133 = vsub.s32 0, %v132
    %v134 = vrot.slane %v129, %v133
    %v136 = vmul.f32 %v125, %v134
    %v137 = vld [vmem:[%s3] sm:$0x1]
    %v139 = vlaneseq
    %v140 = vshrl.u32 %v139, 7
    %v141 = vsub.s32 0, %v140
    %v142 = vrot.slane %v137, %v141
    %v144 = vmul.f32 %v125, %v142
    %vm145 = vcmask 130048
    %v146 = vsel %vm145, %v136, 0.0
    %147 = vadd.xlane.f32.xlu0 %v146
    %v148 = vpop.xlane.xlu0 %147
    %v149 = vsel %vm145, %v144, 0.0
    %150 = vadd.xlane.f32.xlu0 %v149
    %v151 = vpop.xlane.xlu0 %150
    %153 = vrot.lane.b32.xlu0 %v136, 112
    %v154 = vpop.permute.xlu0 %153
    %v156 = vsel %vm145, %v154, 0.0
    %157 = vadd.xlane.f32.xlu0 %v156
    %v158 = vpop.xlane.xlu0 %157
    %160 = vrot.lane.b32.xlu0 %v144, 112
    %v161 = vpop.permute.xlu0 %160
    %v163 = vsel %vm145, %v161, 0.0
    %164 = vadd.xlane.f32.xlu0 %v163
    %v165 = vpop.xlane.xlu0 %164
    %vm166 = vcmask 7168
    %v167 = vsel %vm166, %v148, %v158
    %vm168 = vcmask 15360
    %169 = vst.msk [vmem:[%s5] sm:$0xff] %vm168, %v167
    %v170 = vsel %vm166, %v151, %v165
    %171 = vst.msk [vmem:[%s6] sm:$0xff] %vm168, %v170
    %173 = vrot.lane.b32.xlu0 %v125, 96
    %v174 = vpop.permute.xlu0 %173
    %176 = vst.msk [vmem:[#allocation8] sm:$0xff] %vm54, %v174
    // Predicated region
    $region26: #{tpu_custom_call.1} parent=1 // pred_check
      _
    $region27: #{tpu_custom_call.1} parent=1 // pred_check_branch
      %178 = sbr.rel (0) target = $region29
    $region28: #{tpu_custom_call.1} parent=1 // pred_region
      %s180 = ssub.s32 128, 128
      %181 = vsyncadd [#allocation4], %s180
      %s183 = sshll.u32 [#allocation7], 4
      %s184 = int_to_ptr.vmem [resolvable:$true] %s183
      %186 = dma.vmem_to_hbm [thread:$0]  %s184, 128, %s4, [#allocation4]
    $region29: #{tpu_custom_call.1} parent=1 // pred_fallthru
      _
    // Predicated region
    $region30: #{tpu_custom_call.1} parent=1 // pred_check
      _
    $region31: #{tpu_custom_call.1} parent=1 // pred_check_branch
      %188 = sbr.rel (0) target = $region33
    $region32: #{tpu_custom_call.1} parent=1 // pred_region
      _
    $region33: #{tpu_custom_call.1} parent=1 // pred_fallthru
      _
    // Predicated region
    $region34: #{tpu_custom_call.1} parent=1 // pred_check
      _
    $region35: #{tpu_custom_call.1} parent=1 // pred_check_branch
      %190 = sbr.rel (0) target = $region37
    $region36: #{tpu_custom_call.1} parent=1 // pred_region
      _
    $region37: #{tpu_custom_call.1} parent=1 // pred_fallthru
      _
    // Predicated region
    $region38: #{tpu_custom_call.1} parent=1 // pred_check
      _
    $region39: #{tpu_custom_call.1} parent=1 // pred_check_branch
      %192 = sbr.rel (0) target = $region41
    $region40: #{tpu_custom_call.1} parent=1 // pred_region
      %s194 = ssub.s32 128, 128
      %195 = vsyncadd [#allocation9], %s194
      %s197 = sshll.u32 [#allocation8], 4
      %s198 = int_to_ptr.vmem [resolvable:$true] %s197
      %200 = dma.vmem_to_hbm [thread:$0]  %s198, 128, %s7, [#allocation9]
    $region41: #{tpu_custom_call.1} parent=1 // pred_fallthru
      _
    // Predicated region
    $region42: #{tpu_custom_call.1} parent=1 // pred_check
      _
    $region43: #{tpu_custom_call.1} parent=1 // pred_check_branch
      %202 = sbr.rel (0) target = $region45
    $region44: #{tpu_custom_call.1} parent=1 // pred_region
      %203 = dma.done [#allocation4], 128
    $region45: #{tpu_custom_call.1} parent=1 // pred_fallthru
      _
    // Predicated region
    $region46: #{tpu_custom_call.1} parent=1 // pred_check
      _
    $region47: #{tpu_custom_call.1} parent=1 // pred_check_branch
      %205 = sbr.rel (0) target = $region49
    $region48: #{tpu_custom_call.1} parent=1 // pred_region
      _
    $region49: #{tpu_custom_call.1} parent=1 // pred_fallthru
      _
    // Predicated region
    $region50: #{tpu_custom_call.1} parent=1 // pred_check
      _
    $region51: #{tpu_custom_call.1} parent=1 // pred_check_branch
      %207 = sbr.rel (0) target = $region53
    $region52: #{tpu_custom_call.1} parent=1 // pred_region
      _
    $region53: #{tpu_custom_call.1} parent=1 // pred_fallthru
      _
    // Predicated region
    $region54: #{tpu_custom_call.1} parent=1 // pred_check
      _
    $region55: #{tpu_custom_call.1} parent=1 // pred_check_branch
      %209 = sbr.rel (0) target = $region57
    $region56: #{tpu_custom_call.1} parent=1 // pred_region
      %210 = dma.done [#allocation9], 128
    $region57: #{tpu_custom_call.1} parent=1 // pred_fallthru
      _
    %211 = vsyncpa [#allocation3], 1
    %212 = vsyncpa [#allocation6], 1
    %213 = vsyncpa [#allocation4], 1
    %214 = vsyncpa [#allocation9], 1

</llo_original>
